<compile_context>
chip_gen: v5e
topology: v5e:2x2
jax: 0.10.0
libtpu: 0.0.40
codegen_flags: <defaults>
</compile_context>

<pallas_src>
import jax
import jax.numpy as jnp
from jax.experimental import pallas as pl
from jax.experimental.pallas import tpu as pltpu

OUTPUT_DIM = 3          # actor action count (PyTorch default output_dim=3)
HEAD_W = 8              # fused head width: lanes 0:3 actor, lane 3 critic, 4:8 pad
NEG_BIG = -1e30         # finite "minus infinity" for the softmax padding mask
                        # (relies on f32 exp underflow -> exactly 0; keep finite)


def actor_critic_kernel(x_ref, w1_ref, b1_ref, w2_ref, b2_ref,
                        wh_ref, bh_ref, mask_ref, sel_ref, out_ref):
    # f32 -> bf16 cast in-kernel (input stays unpadded f32 in HBM)
    x = x_ref[...].astype(jnp.bfloat16)

    # shared MLP: Linear + ReLU + Linear + ReLU (bf16 MXU matmuls, f32 accumulation)
    h = jnp.dot(x, w1_ref[...], preferred_element_type=jnp.float32) + b1_ref[...]
    h = jnp.maximum(h, 0.0).astype(jnp.bfloat16)
    h = jnp.dot(h, w2_ref[...], preferred_element_type=jnp.float32) + b2_ref[...]
    h = jnp.maximum(h, 0.0).astype(jnp.bfloat16)

    # fused 8-wide head: lanes 0:3 = actor logits, lane 3 = critic value
    fused = jnp.dot(h, wh_ref[...], preferred_element_type=jnp.float32) + bh_ref[...]

    # softmax over the 3 actor lanes; mask pre-bakes NEG_BIG on lanes >= 3
    logits = fused + mask_ref[...]
    m = jnp.max(logits, axis=-1, keepdims=True)
    e = jnp.exp(logits - m)                         # masked lanes -> exactly 0
    denom = jnp.sum(e, axis=-1, keepdims=True)
    probs = e / denom                               # exact divide: probs sum to 1

    # lanes 0:3 = probs, lane 3 = critic value (one-hot selector), 4:8 = 0
    out_ref[...] = probs + fused * sel_ref[...]


def _round_up(n, m):
    return ((n + m - 1) // m) * m


def _choose_b_tile(B):
    """Adaptive batch tile: no waste for tiny B, >=2 grid steps for mid B
    (uses both v7x TensorCores), 1024-row tiles for large B (amortizes the
    ~0.35 us per-grid-step overhead)."""
    if B < 32:
        return _round_up(B, 8)
    return min(1024, _round_up(pl.cdiv(B, 2), 16))


def _compiler_params(b_tile, d_in, hidden):
    # rough VMEM budget: resident bf16 weights + double-buffered x/out tiles
    # + f32 intermediate activations + slack
    weights = 2 * (d_in * hidden + hidden * hidden + hidden * HEAD_W)
    tiles = 2 * (b_tile * d_in * 4 + b_tile * HEAD_W * 4)
    interm = 3 * b_tile * hidden * 4
    est = weights + tiles + interm + (2 << 20)
    kwargs = dict(dimension_semantics=("parallel",))
    if est > (28 << 20):
        # only when hidden_dim / b_tile scale far past the module's slider
        # range; keep below v7x's 64 MiB physical VMEM.
        kwargs["vmem_limit_bytes"] = int(min(est, 60 << 20))
    return pltpu.CompilerParams(**kwargs)


@jax.jit
def actor_critic_forward(x, params):
    """x: (B, D_in) f32.  Returns (probs (B, 3), value (B, 1)) in f32."""
    w1, b1, w2, b2, wh, bh = params
    B, D_in = x.shape
    H = w1.shape[1]

    b_tile = _choose_b_tile(B)
    B_pad = _round_up(B, b_tile)
    if B_pad != B:
        x = jnp.pad(x, ((0, B_pad - B), (0, 0)))   # only op outside the kernel

    # per-lane constants; under jit these are constant-folded at compile time
    lane = jnp.arange(HEAD_W)
    softmax_mask = jnp.where(lane < OUTPUT_DIM, 0.0, NEG_BIG).astype(
        jnp.float32).reshape(1, HEAD_W)
    value_sel = (lane == OUTPUT_DIM).astype(jnp.float32).reshape(1, HEAD_W)

    grid = (B_pad // b_tile,)
    full = lambda i: (0, 0)          # whole-array block for weights/biases
    batched = lambda i: (i, 0)       # batch-tiled block

    out_pad = pl.pallas_call(
        actor_critic_kernel,
        out_shape=jax.ShapeDtypeStruct((B_pad, HEAD_W), jnp.float32),
        grid_spec=pltpu.PrefetchScalarGridSpec(
            num_scalar_prefetch=0,
            grid=grid,
            in_specs=[
                pl.BlockSpec((b_tile, D_in), batched),   # x (f32, cast in-kernel)
                pl.BlockSpec((D_in, H), full),           # w1 (bf16)
                pl.BlockSpec((1, H), full),              # b1 (f32)
                pl.BlockSpec((H, H), full),              # w2 (bf16)
                pl.BlockSpec((1, H), full),              # b2 (f32)
                pl.BlockSpec((H, HEAD_W), full),         # fused head W (bf16)
                pl.BlockSpec((1, HEAD_W), full),         # fused head b (f32)
                pl.BlockSpec((1, HEAD_W), full),         # softmax mask
                pl.BlockSpec((1, HEAD_W), full),         # value-lane selector
            ],
            out_specs=pl.BlockSpec((b_tile, HEAD_W), batched),
        ),
        compiler_params=_compiler_params(b_tile, D_in, H),
    )(x, w1, b1, w2, b2, wh, bh, softmax_mask, value_sel)

    probs = out_pad[:B, :OUTPUT_DIM]
    value = out_pad[:B, OUTPUT_DIM:OUTPUT_DIM + 1]
    return probs, value


def init_params(key, input_dim, hidden_dim, output_dim=OUTPUT_DIM):
    """PyTorch-style Linear init: U(-1/sqrt(fan_in), 1/sqrt(fan_in)).

    Weights are stored in their final kernel-ready form (bf16, fused head),
    so the forward wrapper does no weight reshaping per call.  Actor and
    critic heads are fused into one (hidden, 8) matrix / (1, 8) row:
    actor in lanes 0:output_dim, critic in lane output_dim, zeros elsewhere.
    Biases stay f32.
    """
    ks = jax.random.split(key, 8)

    def linear(kw, kb, fan_in, fan_out):
        bound = 1.0 / jnp.sqrt(fan_in)
        w = jax.random.uniform(kw, (fan_in, fan_out), jnp.float32, -bound, bound)
        b = jax.random.uniform(kb, (1, fan_out), jnp.float32, -bound, bound)
        return w, b

    w1, b1 = linear(ks[0], ks[1], input_dim, hidden_dim)
    w2, b2 = linear(ks[2], ks[3], hidden_dim, hidden_dim)
    wa, ba = linear(ks[4], ks[5], hidden_dim, output_dim)
    wc, bc = linear(ks[6], ks[7], hidden_dim, 1)

    wh = (jnp.zeros((hidden_dim, HEAD_W), jnp.float32)
          .at[:, :output_dim].set(wa)
          .at[:, output_dim:output_dim + 1].set(wc))
    bh = (jnp.zeros((1, HEAD_W), jnp.float32)
          .at[:, :output_dim].set(ba)
          .at[:, output_dim:output_dim + 1].set(bc))

    return (w1.astype(jnp.bfloat16), b1,
            w2.astype(jnp.bfloat16), b2,
            wh.astype(jnp.bfloat16), bh)


def reference_forward(x, params):
    """Pure-JAX reference with the same bf16-weight / f32-accumulate recipe."""
    w1, b1, w2, b2, wh, bh = params
    h = jnp.dot(x.astype(jnp.bfloat16), w1,
                preferred_element_type=jnp.float32) + b1
    h = jnp.maximum(h, 0.0).astype(jnp.bfloat16)
    h = jnp.dot(h, w2, preferred_element_type=jnp.float32) + b2
    h = jnp.maximum(h, 0.0).astype(jnp.bfloat16)
    fused = jnp.dot(h, wh, preferred_element_type=jnp.float32) + bh
    probs = jax.nn.softmax(fused[:, :OUTPUT_DIM], axis=-1)
    value = fused[:, OUTPUT_DIM:OUTPUT_DIM + 1]
    return probs, value


if __name__ == "__main__":
    B, D_IN, HIDDEN = 8, 32, 128

    key = jax.random.PRNGKey(0)
    kx, kp = jax.random.split(key)
    x = jax.random.normal(kx, (B, D_IN), jnp.float32)
    params = init_params(kp, D_IN, HIDDEN)

    probs, value = actor_critic_forward(x, params)
    jax.block_until_ready((probs, value))

    ref_probs, ref_value = reference_forward(x, params)
    assert probs.shape == (B, OUTPUT_DIM) and value.shape == (B, 1)
    # bf16 matmuls -> loosened tolerance vs the f32 PyTorch module
    assert jnp.allclose(probs, ref_probs, atol=1e-2), "actor probs mismatch"
    assert jnp.allclose(value, ref_value, atol=1e-2), "critic value mismatch"
    # exact divide in the softmax epilogue: rows sum to 1 to f32 precision
    assert jnp.allclose(jnp.sum(probs, axis=-1), 1.0, atol=1e-4)

    print("KERNEL_OK")
</pallas_src>

<mosaic_0001>
module attributes {stable_mosaic.version = 11 : i64} {
  func.func @actor_critic_kernel(%arg0: i32, %arg1: memref<8x32xf32, #tpu.memory_space<vmem>>, %arg2: memref<32x128xbf16, #tpu.memory_space<vmem>>, %arg3: memref<1x128xf32, #tpu.memory_space<vmem>>, %arg4: memref<128x128xbf16, #tpu.memory_space<vmem>>, %arg5: memref<1x128xf32, #tpu.memory_space<vmem>>, %arg6: memref<128x8xbf16, #tpu.memory_space<vmem>>, %arg7: memref<1x8xf32, #tpu.memory_space<vmem>>, %arg8: memref<1x8xf32, #tpu.memory_space<vmem>>, %arg9: memref<1x8xf32, #tpu.memory_space<vmem>>, %arg10: memref<8x8xf32, #tpu.memory_space<vmem>>) attributes {dimension_semantics = [#tpu.dimension_semantics<parallel>], iteration_bounds = array<i64: 1>, scalar_prefetch = 0 : i64, scratch_operands = 0 : i64, tpu.core_type = #tpu.core_type<tc>, window_params = [{transform_indices = @transform_0, window_bounds = array<i64: 8, 32>}, {pipeline_mode = #tpu.pipeline_mode<synchronous>, transform_indices = @transform_1, window_bounds = array<i64: 32, 128>}, {pipeline_mode = #tpu.pipeline_mode<synchronous>, transform_indices = @transform_2, window_bounds = array<i64: 1, 128>}, {pipeline_mode = #tpu.pipeline_mode<synchronous>, transform_indices = @transform_3, window_bounds = array<i64: 128, 128>}, {pipeline_mode = #tpu.pipeline_mode<synchronous>, transform_indices = @transform_4, window_bounds = array<i64: 1, 128>}, {pipeline_mode = #tpu.pipeline_mode<synchronous>, transform_indices = @transform_5, window_bounds = array<i64: 128, 8>}, {pipeline_mode = #tpu.pipeline_mode<synchronous>, transform_indices = @transform_6, window_bounds = array<i64: 1, 8>}, {pipeline_mode = #tpu.pipeline_mode<synchronous>, transform_indices = @transform_7, window_bounds = array<i64: 1, 8>}, {pipeline_mode = #tpu.pipeline_mode<synchronous>, transform_indices = @transform_8, window_bounds = array<i64: 1, 8>}, {transform_indices = @transform_9, window_bounds = array<i64: 8, 8>}]} {
    %c0 = arith.constant 0 : index
    %c0_0 = arith.constant 0 : index
    %0 = vector.load %arg1[%c0, %c0_0] : memref<8x32xf32, #tpu.memory_space<vmem>>, vector<8x32xf32>
    %1 = arith.truncf %0 : vector<8x32xf32> to vector<8x32xbf16>
    %c0_1 = arith.constant 0 : index
    %c0_2 = arith.constant 0 : index
    %2 = vector.load %arg2[%c0_1, %c0_2] : memref<32x128xbf16, #tpu.memory_space<vmem>>, vector<32x128xbf16>
    %cst = arith.constant dense<0.000000e+00> : vector<8x128xf32>
    %3 = tpu.matmul %1, %2, %cst {dimension_numbers = #tpu.dot_dimension_numbers<[1], [0], [0], [1], [0, 0, 1, 1], [], []>} : vector<8x32xbf16>, vector<32x128xbf16>, vector<8x128xf32> -> vector<8x128xf32>
    %c0_3 = arith.constant 0 : index
    %c0_4 = arith.constant 0 : index
    %4 = vector.load %arg3[%c0_3, %c0_4] : memref<1x128xf32, #tpu.memory_space<vmem>>, vector<1x128xf32>
    %5 = vector.broadcast %4 : vector<1x128xf32> to vector<8x128xf32>
    %6 = arith.addf %3, %5 : vector<8x128xf32>
    %cst_5 = arith.constant 0.000000e+00 : f32
    %7 = vector.broadcast %cst_5 : f32 to vector<8x128xf32>
    %8 = arith.maximumf %6, %7 : vector<8x128xf32>
    %9 = arith.truncf %8 : vector<8x128xf32> to vector<8x128xbf16>
    %c0_6 = arith.constant 0 : index
    %c0_7 = arith.constant 0 : index
    %10 = vector.load %arg4[%c0_6, %c0_7] : memref<128x128xbf16, #tpu.memory_space<vmem>>, vector<128x128xbf16>
    %cst_8 = arith.constant dense<0.000000e+00> : vector<8x128xf32>
    %11 = tpu.matmul %9, %10, %cst_8 {dimension_numbers = #tpu.dot_dimension_numbers<[1], [0], [0], [1], [0, 0, 1, 1], [], []>} : vector<8x128xbf16>, vector<128x128xbf16>, vector<8x128xf32> -> vector<8x128xf32>
    %c0_9 = arith.constant 0 : index
    %c0_10 = arith.constant 0 : index
    %12 = vector.load %arg5[%c0_9, %c0_10] : memref<1x128xf32, #tpu.memory_space<vmem>>, vector<1x128xf32>
    %13 = vector.broadcast %12 : vector<1x128xf32> to vector<8x128xf32>
    %14 = arith.addf %11, %13 : vector<8x128xf32>
    %cst_11 = arith.constant 0.000000e+00 : f32
    %15 = vector.broadcast %cst_11 : f32 to vector<8x128xf32>
    %16 = arith.maximumf %14, %15 : vector<8x128xf32>
    %17 = arith.truncf %16 : vector<8x128xf32> to vector<8x128xbf16>
    %c0_12 = arith.constant 0 : index
    %c0_13 = arith.constant 0 : index
    %18 = vector.load %arg6[%c0_12, %c0_13] : memref<128x8xbf16, #tpu.memory_space<vmem>>, vector<128x8xbf16>
    %cst_14 = arith.constant dense<0.000000e+00> : vector<8x8xf32>
    %19 = tpu.matmul %17, %18, %cst_14 {dimension_numbers = #tpu.dot_dimension_numbers<[1], [0], [0], [1], [0, 0, 1, 1], [], []>} : vector<8x128xbf16>, vector<128x8xbf16>, vector<8x8xf32> -> vector<8x8xf32>
    %c0_15 = arith.constant 0 : index
    %c0_16 = arith.constant 0 : index
    %20 = vector.load %arg7[%c0_15, %c0_16] : memref<1x8xf32, #tpu.memory_space<vmem>>, vector<1x8xf32>
    %21 = vector.broadcast %20 : vector<1x8xf32> to vector<8x8xf32>
    %22 = arith.addf %19, %21 : vector<8x8xf32>
    %c0_17 = arith.constant 0 : index
    %c0_18 = arith.constant 0 : index
    %23 = vector.load %arg8[%c0_17, %c0_18] : memref<1x8xf32, #tpu.memory_space<vmem>>, vector<1x8xf32>
    %24 = vector.broadcast %23 : vector<1x8xf32> to vector<8x8xf32>
    %25 = arith.addf %22, %24 : vector<8x8xf32>
    %cst_19 = arith.constant dense<0xFF800000> : vector<8xf32>
    %26 = vector.multi_reduction <maximumf>, %25, %cst_19 [1] : vector<8x8xf32> to vector<8xf32>
    %27 = vector.shape_cast %26 : vector<8xf32> to vector<8x1xf32>
    %28 = vector.broadcast %27 : vector<8x1xf32> to vector<8x8xf32>
    %29 = arith.subf %25, %28 : vector<8x8xf32>
    %30 = math.exp %29 : vector<8x8xf32>
    %cst_20 = arith.constant dense<0.000000e+00> : vector<8xf32>
    %31 = vector.multi_reduction <add>, %30, %cst_20 [1] : vector<8x8xf32> to vector<8xf32>
    %32 = vector.shape_cast %31 : vector<8xf32> to vector<8x1xf32>
    %33 = vector.broadcast %32 : vector<8x1xf32> to vector<8x8xf32>
    %34 = arith.divf %30, %33 : vector<8x8xf32>
    %c0_21 = arith.constant 0 : index
    %c0_22 = arith.constant 0 : index
    %35 = vector.load %arg9[%c0_21, %c0_22] : memref<1x8xf32, #tpu.memory_space<vmem>>, vector<1x8xf32>
    %36 = vector.broadcast %35 : vector<1x8xf32> to vector<8x8xf32>
    %37 = arith.mulf %22, %36 : vector<8x8xf32>
    %38 = arith.addf %34, %37 : vector<8x8xf32>
    %c0_23 = arith.constant 0 : index
    %c0_24 = arith.constant 0 : index
    %39 = vector.load %arg10[%c0_23, %c0_24] : memref<8x8xf32, #tpu.memory_space<vmem>>, vector<8x8xf32>
    tpu.vector_store %arg10[%c0_23, %c0_24], %38 {strides = array<i32>} : memref<8x8xf32, #tpu.memory_space<vmem>>, vector<8x8xf32>,
    return
  }
  func.func @transform_0(%arg0: i32) -> (i32, i32) {
    %c0_i32 = arith.constant 0 : i32
    %c0_i32_0 = arith.constant 0 : i32
    return %arg0, %c0_i32 : i32, i32
  }
  func.func @transform_1(%arg0: i32) -> (i32, i32) {
    %c0_i32 = arith.constant 0 : i32
    %c0_i32_0 = arith.constant 0 : i32
    %c0_i32_1 = arith.constant 0 : i32
    return %c0_i32, %c0_i32_0 : i32, i32
  }
  func.func @transform_2(%arg0: i32) -> (i32, i32) {
    %c0_i32 = arith.constant 0 : i32
    %c0_i32_0 = arith.constant 0 : i32
    %c0_i32_1 = arith.constant 0 : i32
    return %c0_i32, %c0_i32_0 : i32, i32
  }
  func.func @transform_3(%arg0: i32) -> (i32, i32) {
    %c0_i32 = arith.constant 0 : i32
    %c0_i32_0 = arith.constant 0 : i32
    %c0_i32_1 = arith.constant 0 : i32
    return %c0_i32, %c0_i32_0 : i32, i32
  }
  func.func @transform_4(%arg0: i32) -> (i32, i32) {
    %c0_i32 = arith.constant 0 : i32
    %c0_i32_0 = arith.constant 0 : i32
    %c0_i32_1 = arith.constant 0 : i32
    return %c0_i32, %c0_i32_0 : i32, i32
  }
  func.func @transform_5(%arg0: i32) -> (i32, i32) {
    %c0_i32 = arith.constant 0 : i32
    %c0_i32_0 = arith.constant 0 : i32
    %c0_i32_1 = arith.constant 0 : i32
    return %c0_i32, %c0_i32_0 : i32, i32
  }
  func.func @transform_6(%arg0: i32) -> (i32, i32) {
    %c0_i32 = arith.constant 0 : i32
    %c0_i32_0 = arith.constant 0 : i32
    %c0_i32_1 = arith.constant 0 : i32
    return %c0_i32, %c0_i32_0 : i32, i32
  }
  func.func @transform_7(%arg0: i32) -> (i32, i32) {
    %c0_i32 = arith.constant 0 : i32
    %c0_i32_0 = arith.constant 0 : i32
    %c0_i32_1 = arith.constant 0 : i32
    return %c0_i32, %c0_i32_0 : i32, i32
  }
  func.func @transform_8(%arg0: i32) -> (i32, i32) {
    %c0_i32 = arith.constant 0 : i32
    %c0_i32_0 = arith.constant 0 : i32
    %c0_i32_1 = arith.constant 0 : i32
    return %c0_i32, %c0_i32_0 : i32, i32
  }
  func.func @transform_9(%arg0: i32) -> (i32, i32) {
    %c0_i32 = arith.constant 0 : i32
    %c0_i32_0 = arith.constant 0 : i32
    return %arg0, %c0_i32 : i32, i32
  }
}

</mosaic_0001>

<llo_original>
// kernel: actor_critic_forward.1
$region0: #{actor_critic_forward.1}
  #allocation0 [shape = 'u32[]', space=smem, size = 0x4, offset = 0x4, fixed_abs, tag = 'smem constant byte address 0x4 - core index']
  #allocation1 [shape = 'u32[72,128]{1,0:T(1,128)}', space=vmem, size = 0x9000, scoped, tag = 'internal scratch']
  %s0 = inlined_call_operand.hbm [shape: f32[8,32], index: 0, kind: input, shape index: {}]
  %s1 = inlined_call_operand.hbm [shape: bf16[32,128], index: 1, kind: input, shape index: {}]
  %s2 = inlined_call_operand.vmem [shape: f32[1,128], index: 2, kind: input, shape index: {}]
  %s3 = inlined_call_operand.vmem [shape: bf16[128,128], index: 3, kind: input, shape index: {}]
  %s4 = inlined_call_operand.vmem [shape: f32[1,128], index: 4, kind: input, shape index: {}]
  %s5 = inlined_call_operand.vmem [shape: bf16[128,8], index: 5, kind: input, shape index: {}]
  %s6 = inlined_call_operand.vmem [shape: f32[1,8], index: 6, kind: input, shape index: {}]
  %s7 = inlined_call_operand.vmem [shape: f32[1,8], index: 7, kind: input, shape index: {}]
  %s8 = inlined_call_operand.vmem [shape: f32[1,8], index: 8, kind: input, shape index: {}]
  %s9 = inlined_call_operand.vmem [shape: f32[8,8], index: 9, kind: output, shape index: {}]
  %s10 = sld [smem:[#allocation0]]
  $region54: #{actor_critic_forward.1} parent=0
    _
  %s12 = ssub.s32 1, %s10
  %s13 = scalar_select 0, %s12, %s10
  $region1: #{actor_critic_forward.1} parent=0
    #allocation2 [shape = 'u8[4096]{0}', space=vmem, size = 0x1000, scoped, tag = 'input window, operand 0, single buffered']
    #allocation3 [shape = 's32[1]{0}', space=sflag, size = 0x4, scoped, tag = 'scoped memory for actor_critic_forward.1']
    #allocation4 [shape = 'u8[8192]{0}', space=vmem, size = 0x2000, scoped, tag = 'input window, operand 1, single buffered']
    #allocation5 [shape = 's32[1]{0}', space=sflag, size = 0x4, scoped, tag = 'scoped memory for actor_critic_forward.1']
    %14 = vsyncpa [#allocation3], 0
    %15 = vsyncpa [#allocation5], 0
    // Predicated region
    $region2: #{actor_critic_forward.1} parent=1 // pred_check
      _
    $region3: #{actor_critic_forward.1} parent=1 // pred_check_branch
      %17 = sbr.rel (0) target = $region5
    $region4: #{actor_critic_forward.1} parent=1 // pred_region
      %19 = vsyncadd [#allocation3], 0
      %s21 = sshll.u32 %s0, 4
      %s22 = int_to_ptr.hbm [resolvable:$true] %s21
      %s23 = sshll.u32 [#allocation2], 4
      %s24 = int_to_ptr.vmem [resolvable:$true] %s23
      %26 = dma.hbm_to_vmem [thread:$0]  %s22, 128, %s24, [#allocation3]
    $region5: #{actor_critic_forward.1} parent=1 // pred_fallthru
      _
    // Predicated region
    $region6: #{actor_critic_forward.1} parent=1 // pred_check
      _
    $region7: #{actor_critic_forward.1} parent=1 // pred_check_branch
      %28 = sbr.rel (0) target = $region9
    $region8: #{actor_critic_forward.1} parent=1 // pred_region
      %30 = vsyncadd [#allocation5], 0
      %s31 = sshll.u32 %s1, 4
      %s32 = int_to_ptr.hbm [resolvable:$true] %s31
      %s33 = sshll.u32 [#allocation4], 4
      %s34 = int_to_ptr.vmem [resolvable:$true] %s33
      %39 = dma.hbm_to_vmem [thread:$0]  %s32, 256, %s34, [#allocation5], 64, 64, 4
    $region9: #{actor_critic_forward.1} parent=1 // pred_fallthru
      _
    // Predicated region
    $region10: #{actor_critic_forward.1} parent=1 // pred_check
      _
    $region11: #{actor_critic_forward.1} parent=1 // pred_check_branch
      %41 = sbr.rel (0) target = $region13
    $region12: #{actor_critic_forward.1} parent=1 // pred_region
      _
    $region13: #{actor_critic_forward.1} parent=1 // pred_fallthru
      _
    // Predicated region
    $region14: #{actor_critic_forward.1} parent=1 // pred_check
      _
    $region15: #{actor_critic_forward.1} parent=1 // pred_check_branch
      %43 = sbr.rel (0) target = $region17
    $region16: #{actor_critic_forward.1} parent=1 // pred_region
      _
    $region17: #{actor_critic_forward.1} parent=1 // pred_fallthru
      _
    // Predicated region
    $region18: #{actor_critic_forward.1} parent=1 // pred_check
      _
    $region19: #{actor_critic_forward.1} parent=1 // pred_check_branch
      %45 = sbr.rel (0) target = $region21
    $region20: #{actor_critic_forward.1} parent=1 // pred_region
      _
    $region21: #{actor_critic_forward.1} parent=1 // pred_fallthru
      _
    // Predicated region
    $region22: #{actor_critic_forward.1} parent=1 // pred_check
      _
    $region23: #{actor_critic_forward.1} parent=1 // pred_check_branch
      %47 = sbr.rel (0) target = $region25
    $region24: #{actor_critic_forward.1} parent=1 // pred_region
      _
    $region25: #{actor_critic_forward.1} parent=1 // pred_fallthru
      _
    // Predicated region
    $region26: #{actor_critic_forward.1} parent=1 // pred_check
      _
    $region27: #{actor_critic_forward.1} parent=1 // pred_check_branch
      %49 = sbr.rel (0) target = $region29
    $region28: #{actor_critic_forward.1} parent=1 // pred_region
      _
    $region29: #{actor_critic_forward.1} parent=1 // pred_fallthru
      _
    // Predicated region
    $region30: #{actor_critic_forward.1} parent=1 // pred_check
      _
    $region31: #{actor_critic_forward.1} parent=1 // pred_check_branch
      %51 = sbr.rel (0) target = $region33
    $region32: #{actor_critic_forward.1} parent=1 // pred_region
      _
    $region33: #{actor_critic_forward.1} parent=1 // pred_fallthru
      _
    // Predicated region
    $region34: #{actor_critic_forward.1} parent=1 // pred_check
      _
    $region35: #{actor_critic_forward.1} parent=1 // pred_check_branch
      %53 = sbr.rel (0) target = $region37
    $region36: #{actor_critic_forward.1} parent=1 // pred_region
      _
    $region37: #{actor_critic_forward.1} parent=1 // pred_fallthru
      _
    // Predicated region
    $region38: #{actor_critic_forward.1} parent=1 // pred_check
      _
    $region39: #{actor_critic_forward.1} parent=1 // pred_check_branch
      %55 = sbr.rel (0) target = $region41
    $region40: #{actor_critic_forward.1} parent=1 // pred_region
      %57 = dma.done [#allocation3], 128
    $region41: #{actor_critic_forward.1} parent=1 // pred_fallthru
      _
    // Predicated region
    $region42: #{actor_critic_forward.1} parent=1 // pred_check
      _
    $region43: #{actor_critic_forward.1} parent=1 // pred_check_branch
      %59 = sbr.rel (0) target = $region45
    $region44: #{actor_critic_forward.1} parent=1 // pred_region
      %61 = dma.done [#allocation5], 256
    $region45: #{actor_critic_forward.1} parent=1 // pred_fallthru
      _
    %v63 = vld [vmem:[#allocation2] sm:$0xff]
    %v64 = vpack.c.bf16 %v63, %v63
    %v65 = vld [vmem:[#allocation4] sm:$0xf]
    %v66 = vld [vmem:[#allocation4 + $0x4] sm:$0xf]
    %v67 = vld [vmem:[#allocation4 + $0x8] sm:$0xf]
    %v68 = vld [vmem:[#allocation4 + $0xc] sm:$0xf]
    %v69 = vld [vmem:[%s2] sm:$0x1]
    %v71 = vperm.slane %v69, 0
    %v77 = vunpack.c.l.b16 %v65
    %v78 = vunpack.c.l.b16 %v66
    %v79 = vunpack.c.l.b16 %v67
    %v80 = vunpack.c.l.b16 %v68
    %v81 = vpack.c.b16 %v78, %v77
    %v82 = vpack.c.b16 %v80, %v79
    %vm85 = vcmask 261120
    %v87 = vsel %vm85, %v64, 0
    %89 = vmatpush.bf16.msra.mxu0 0
    %90 = vmatpush.bf16.msra.mxu0 0
    %91 = vmatpush.bf16.msra.mxu0 0
    %92 = vmatpush.bf16.msra.mxu0 0
    %93 = vmatpush.bf16.msra.mxu0 0
    %94 = vmatpush.bf16.msra.mxu0 0
    %95 = vmatpush.bf16.msra.mxu0 %v82
    %96 = vmatpush.bf16.msra.mxu0 %v81
    %97 = vmatmul.bf16.gmra.mxu0 %v87
    %v98 = vpop.f32.mrf.mxu0
    %v99 = vadd.f32 %v71, %v98
    %v100 = vpop.f32.mrf.mxu0
    %101 = vdwg.mxu0
    %v102 = vmax.f32 %v99, 0.0
    %v103 = vpack.c.bf16 %v102, %v102
    %v104 = vld [vmem:[%s3] sm:$0xf]
    %v105 = vld [vmem:[%s3 + $0x4] sm:$0xf]
    %v106 = vld [vmem:[%s3 + $0x8] sm:$0xf]
    %v107 = vld [vmem:[%s3 + $0xc] sm:$0xf]
    %v108 = vld [vmem:[%s3 + $0x10] sm:$0xf]
    %v109 = vld [vmem:[%s3 + $0x14] sm:$0xf]
    %v110 = vld [vmem:[%s3 + $0x18] sm:$0xf]
    %v111 = vld [vmem:[%s3 + $0x1c] sm:$0xf]
    %v112 = vld [vmem:[%s3 + $0x20] sm:$0xf]
    %v113 = vld [vmem:[%s3 + $0x24] sm:$0xf]
    %v114 = vld [vmem:[%s3 + $0x28] sm:$0xf]
    %v115 = vld [vmem:[%s3 + $0x2c] sm:$0xf]
    %v116 = vld [vmem:[%s3 + $0x30] sm:$0xf]
    %v117 = vld [vmem:[%s3 + $0x34] sm:$0xf]
    %v118 = vld [vmem:[%s3 + $0x38] sm:$0xf]
    %v119 = vld [vmem:[%s3 + $0x3c] sm:$0xf]
    %v120 = vld [vmem:[%s4] sm:$0x1]
    %v122 = vperm.slane %v120, 0
    %v140 = vunpack.c.l.b16 %v104
    %v141 = vunpack.c.l.b16 %v105
    %v142 = vunpack.c.l.b16 %v106
    %v143 = vunpack.c.l.b16 %v107
    %v144 = vunpack.c.l.b16 %v108
    %v145 = vunpack.c.l.b16 %v109
    %v146 = vunpack.c.l.b16 %v110
    %v147 = vunpack.c.l.b16 %v111
    %v148 = vunpack.c.l.b16 %v112
    %v149 = vunpack.c.l.b16 %v113
    %v150 = vunpack.c.l.b16 %v114
    %v151 = vunpack.c.l.b16 %v115
    %v152 = vunpack.c.l.b16 %v116
    %v153 = vunpack.c.l.b16 %v117
    %v154 = vunpack.c.l.b16 %v118
    %v155 = vunpack.c.l.b16 %v119
    %v156 = vpack.c.b16 %v141, %v140
    %v157 = vpack.c.b16 %v143, %v142
    %v158 = vpack.c.b16 %v145, %v144
    %v159 = vpack.c.b16 %v147, %v146
    %v160 = vpack.c.b16 %v149, %v148
    %v161 = vpack.c.b16 %v151, %v150
    %v162 = vpack.c.b16 %v153, %v152
    %v163 = vpack.c.b16 %v155, %v154
    %172 = vmatpush.bf16.msra.mxu0 %v163
    %173 = vmatpush.bf16.msra.mxu0 %v162
    %174 = vmatpush.bf16.msra.mxu0 %v161
    %175 = vmatpush.bf16.msra.mxu0 %v160
    %176 = vmatpush.bf16.msra.mxu0 %v159
    %177 = vmatpush.bf16.msra.mxu0 %v158
    %178 = vmatpush.bf16.msra.mxu0 %v157
    %179 = vmatpush.bf16.msra.mxu0 %v156
    %180 = vmatmul.bf16.gmra.mxu0 %v103
    %v181 = vpop.f32.mrf.mxu0
    %v182 = vadd.f32 %v122, %v181
    %v183 = vpop.f32.mrf.mxu0
    %184 = vdwg.mxu0
    %v185 = vmax.f32 %v182, 0.0
    %v186 = vpack.c.bf16 %v185, %v185
    %v187 = vld [vmem:[%s5] sm:$0xf]
    %v188 = vld [vmem:[%s5 + $0x4] sm:$0xf]
    %v189 = vld [vmem:[%s5 + $0x8] sm:$0xf]
    %v190 = vld [vmem:[%s5 + $0xc] sm:$0xf]
    %v191 = vld [vmem:[%s5 + $0x10] sm:$0xf]
    %v192 = vld [vmem:[%s5 + $0x14] sm:$0xf]
    %v193 = vld [vmem:[%s5 + $0x18] sm:$0xf]
    %v194 = vld [vmem:[%s5 + $0x1c] sm:$0xf]
    %v195 = vld [vmem:[%s5 + $0x20] sm:$0xf]
    %v196 = vld [vmem:[%s5 + $0x24] sm:$0xf]
    %v197 = vld [vmem:[%s5 + $0x28] sm:$0xf]
    %v198 = vld [vmem:[%s5 + $0x2c] sm:$0xf]
    %v199 = vld [vmem:[%s5 + $0x30] sm:$0xf]
    %v200 = vld [vmem:[%s5 + $0x34] sm:$0xf]
    %v201 = vld [vmem:[%s5 + $0x38] sm:$0xf]
    %v202 = vld [vmem:[%s5 + $0x3c] sm:$0xf]
    %v203 = vld [vmem:[%s6] sm:$0x1]
    %v205 = vperm.slane %v203, 0
    %v223 = vunpack.c.l.b16 %v187
    %v224 = vunpack.c.l.b16 %v188
    %v225 = vunpack.c.l.b16 %v189
    %v226 = vunpack.c.l.b16 %v190
    %v227 = vunpack.c.l.b16 %v191
    %v228 = vunpack.c.l.b16 %v192
    %v229 = vunpack.c.l.b16 %v193
    %v230 = vunpack.c.l.b16 %v194
    %v231 = vunpack.c.l.b16 %v195
    %v232 = vunpack.c.l.b16 %v196
    %v233 = vunpack.c.l.b16 %v197
    %v234 = vunpack.c.l.b16 %v198
    %v235 = vunpack.c.l.b16 %v199
    %v236 = vunpack.c.l.b16 %v200
    %v237 = vunpack.c.l.b16 %v201
    %v238 = vunpack.c.l.b16 %v202
    %v239 = vpack.c.b16 %v224, %v223
    %v240 = vpack.c.b16 %v226, %v225
    %v241 = vpack.c.b16 %v228, %v227
    %v242 = vpack.c.b16 %v230, %v229
    %v243 = vpack.c.b16 %v232, %v231
    %v244 = vpack.c.b16 %v234, %v233
    %v245 = vpack.c.b16 %v236, %v235
    %v246 = vpack.c.b16 %v238, %v237
    %255 = vmatpush.bf16.msra.mxu0 %v246
    %256 = vmatpush.bf16.msra.mxu0 %v245
    %257 = vmatpush.bf16.msra.mxu0 %v244
    %258 = vmatpush.bf16.msra.mxu0 %v243
    %259 = vmatpush.bf16.msra.mxu0 %v242
    %260 = vmatpush.bf16.msra.mxu0 %v241
    %261 = vmatpush.bf16.msra.mxu0 %v240
    %262 = vmatpush.bf16.msra.mxu0 %v239
    %263 = vmatmul.bf16.gmra.mxu0 %v186
    %v264 = vpop.f32.mrf.mxu0
    %v265 = vadd.f32 %v205, %v264
    %v266 = vpop.f32.mrf.mxu0
    %267 = vdwg.mxu0
    %v268 = vld [vmem:[%s7] sm:$0x1]
    %v270 = vperm.slane %v268, 0
    %v272 = vadd.f32 %v265, %v270
    %vm273 = vcmask 64512
    %v274 = vsel %vm273, %v272, -inf
    %275 = vmax.xlane.f32.xlu0 %v274
    %v276 = vpop.xlane.xlu0 %275
    %v277 = vsub.f32 %v272, %v276
    %v278 = vmul.f32 %v277, 1.442695
    %v279 = vpow.pop %v278
    %v280 = vsel %vm273, %v279, 0.0
    %281 = vadd.xlane.f32.xlu0 %v280
    %v282 = vpop.xlane.xlu0 %281
    %v283 = vrcp.pop %v282
    %v284 = vmul.f32 %v282, %v283
    %v285 = vsub.f32 1.0, %v284
    %v286 = vmul.f32 %v283, %v285
    %v287 = vadd.f32 %v283, %v286
    %vm288 = vweird.f32 %v282
    %vm289 = vweird.f32 %v283
    %vm290 = vmor %vm288, %vm289
    %v291 = vsel %vm290, %v283, %v287
    %v292 = vand.u32 2147483647, %v282
    %vm293 = vcmp.eq.f32.partialorder %v292, 8.507059e+37
    %v294 = vand.u32 %v282, 2147483648
    %v295 = vor.u32 1.1754944e-38, %v294
    %v296 = vsel %vm293, %v295, %v291
    %v297 = vmul.f32 %v279, %v296
    %v298 = vld [vmem:[%s8] sm:$0x1]
    %v300 = vperm.slane %v298, 0
    %v302 = vmul.f32 %v265, %v300
    %v303 = vadd.f32 %v297, %v302
    %304 = vst.msk [vmem:[%s9] sm:$0xff] %vm273, %v303
    // Predicated region
    $region46: #{actor_critic_forward.1} parent=1 // pred_check
      _
    $region47: #{actor_critic_forward.1} parent=1 // pred_check_branch
      %306 = sbr.rel (0) target = $region49
    $region48: #{actor_critic_forward.1} parent=1 // pred_region
      _
    $region49: #{actor_critic_forward.1} parent=1 // pred_fallthru
      _
    // Predicated region
    $region50: #{actor_critic_forward.1} parent=1 // pred_check
      _
    $region51: #{actor_critic_forward.1} parent=1 // pred_check_branch
      %308 = sbr.rel (0) target = $region53
    $region52: #{actor_critic_forward.1} parent=1 // pred_region
      _
    $region53: #{actor_critic_forward.1} parent=1 // pred_fallthru
      _
    %309 = vsyncpa [#allocation3], 1
    %310 = vsyncpa [#allocation5], 1

</llo_original>
